<compile_context>
chip_gen: v5e
topology: v5e:2x2
jax: 0.10.0
libtpu: 0.0.40
codegen_flags: <defaults>
</compile_context>

<pallas_src>
import functools

import jax
import jax.numpy as jnp
from jax.experimental import pallas as pl
from jax.experimental.pallas import tpu as pltpu


def _cnn_kernel(x_ref, w1_ref, b1_ref, w2_ref, b2_ref, out_ref,
                x_scr, h_scr, *, Bt, L, K1, K2, pad1, pad2):
    """One batch block (Bt elements) per grid step.

    x_ref:  (Bt, L, Cin)      f32   input block (cast to bf16 in-kernel)
    w1_ref: (K1, Cin, C1p)    bf16  conv_1 per-tap weights (BN folded, C1 padded to 128)
    b1_ref: (1, C1p)          f32   conv_1 effective bias (zero in padded lanes)
    w2_ref: (K2, C1p, C2p)    bf16  conv_2 per-tap weights (BN folded, padded)
    b2_ref: (1, C2p)          f32   conv_2 effective bias (zero in padded lanes)
    out_ref:(1, Bt, C2p)      f32   max over L of conv_2 output
    x_scr:  (Bt, L+2*pad1, Cin)  bf16  per-batch padded input scratch
    h_scr:  (Bt, L+2*pad2, C1p)  bf16  per-batch padded intermediate scratch
    """
    Cin = x_ref.shape[-1]
    C1p = w1_ref.shape[-1]
    C2p = w2_ref.shape[-1]

    # ---- stage input into the padded scratch; cast f32 -> bf16 here (free VPU work
    #      under the DMA).  Interior fully rewritten every step; halos re-zeroed every
    #      step so this is safe under megacore sharding of the parallel axis. ----
    if pad1 > 0:
        x_scr[:, 0:pad1, :] = jnp.zeros((Bt, pad1, Cin), x_scr.dtype)
        x_scr[:, L + pad1:L + 2 * pad1, :] = jnp.zeros((Bt, pad1, Cin), x_scr.dtype)
    x_scr[:, pad1:pad1 + L, :] = x_ref[...].astype(x_scr.dtype)

    # ---- conv_1: K1 accumulating matmuls (no lane-axis concatenate im2col) ----
    # NOTE: the (Bt, L, C) -> (Bt*L, C) reshapes are free when L is a multiple of the
    # sublane tile (16 for bf16, 8 for f32); they stay correct (just slower) otherwise.
    acc1 = jnp.dot(x_scr[:, pl.ds(0, L), :].reshape(Bt * L, Cin), w1_ref[0],
                   preferred_element_type=jnp.float32)
    for k in range(1, K1):
        acc1 = acc1 + jnp.dot(x_scr[:, pl.ds(k, L), :].reshape(Bt * L, Cin),
                              w1_ref[k], preferred_element_type=jnp.float32)
    h = jnp.maximum(acc1 + b1_ref[...], 0.0)       # (Bt*L, C1p); dropout = identity

    # ---- stage the intermediate (lane-dense 128-wide store) ----
    if pad2 > 0:
        h_scr[:, 0:pad2, :] = jnp.zeros((Bt, pad2, C1p), h_scr.dtype)
        h_scr[:, L + pad2:L + 2 * pad2, :] = jnp.zeros((Bt, pad2, C1p), h_scr.dtype)
    h_scr[:, pad2:pad2 + L, :] = h.reshape(Bt, L, C1p).astype(h_scr.dtype)

    # ---- conv_2: K2 accumulating matmuls ----
    acc2 = jnp.dot(h_scr[:, pl.ds(0, L), :].reshape(Bt * L, C1p), w2_ref[0],
                   preferred_element_type=jnp.float32)
    for k in range(1, K2):
        acc2 = acc2 + jnp.dot(h_scr[:, pl.ds(k, L), :].reshape(Bt * L, C1p),
                              w2_ref[k], preferred_element_type=jnp.float32)
    y = jnp.maximum(acc2 + b2_ref[...], 0.0)       # (Bt*L, C2p)

    # ---- max over the sequence dimension; lane-dense (Bt, C2p) output write ----
    out_ref[0] = jnp.max(y.reshape(Bt, L, C2p), axis=1)


def _fold_bn(w, bias, gamma, beta, eps=1e-5):
    """Fold eval-mode BatchNorm (running_mean=0, running_var=1) into conv w/bias."""
    s = gamma / jnp.sqrt(1.0 + eps)
    return w * s[:, None, None], bias * s + beta


def _round_up(v, m):
    return ((v + m - 1) // m) * m


def _vmem_capacity_bytes():
    try:
        return int(pltpu.get_tpu_info().vmem_capacity_bytes)
    except Exception:
        return 64 * 1024 * 1024    # conservative (v7x per-TensorCore VMEM)


def _per_batch_vmem_bytes(L, Cin, C1p, C2p, pad1, pad2):
    """Physical VMEM bytes per batch element, honoring (8/16,128) tiling."""
    lane = 128
    x_blk = 2 * _round_up(L, 8) * _round_up(Cin, lane) * 4            # f32 in, 2 bufs
    x_s = _round_up(L + 2 * pad1, 16) * _round_up(Cin, lane) * 2      # bf16 scratch
    h_s = _round_up(L + 2 * pad2, 16) * _round_up(C1p, lane) * 2      # bf16 scratch
    live = _round_up(L, 8) * (C1p * 4 + C2p * 4) + _round_up(L, 16) * C1p * 2
    out_blk = 2 * _round_up(C2p, lane) * 4                            # f32 out, 2 bufs
    return x_blk + x_s + h_s + live + out_blk


def cnn_model_forward(x, params, kernels, *, compute_dtype=jnp.bfloat16,
                      min_grid_steps=1, vmem_budget_bytes=None,
                      vmem_limit_bytes=None):
    """x: (B, L, feat_size) float32 -> (B, filters[1]) float32.

    min_grid_steps: pass 2 on TPU v7x so the "parallel" batch axis is sharded evenly
    across both TensorCores; leave at 1 on v5e/v6e (single TC, extra steps are pure
    overhead).
    """
    (w1, bias1, g1, beta1), (w2, bias2, g2, beta2) = params
    K1, K2 = kernels
    assert K1 % 2 == 1 and K2 % 2 == 1, \
        "Conv1d(padding=K//2) only preserves L for odd kernel sizes"
    B, L, Cin = x.shape
    C1, C2 = w1.shape[0], w2.shape[0]
    pad1, pad2 = K1 // 2, K2 // 2
    C1p = _round_up(C1, 128)                        # lane-dense intermediate width
    C2p = _round_up(C2, 128)                        # lane-dense output width

    # ---- fold BN, build per-tap weight matrices, zero-pad channel dims ----
    w1_eff, b1_eff = _fold_bn(w1, bias1, g1, beta1)              # (C1, Cin, K1), (C1,)
    w2_eff, b2_eff = _fold_bn(w2, bias2, g2, beta2)              # (C2, C1, K2), (C2,)
    w1_taps = jnp.transpose(w1_eff, (2, 1, 0))                   # (K1, Cin, C1)
    w1_taps = jnp.pad(w1_taps, ((0, 0), (0, 0), (0, C1p - C1))).astype(compute_dtype)
    w2_taps = jnp.transpose(w2_eff, (2, 1, 0))                   # (K2, C1, C2)
    w2_taps = jnp.pad(w2_taps, ((0, 0), (0, C1p - C1), (0, C2p - C2))).astype(compute_dtype)
    b1_mat = jnp.pad(b1_eff, (0, C1p - C1)).reshape(1, C1p).astype(jnp.float32)
    b2_mat = jnp.pad(b2_eff, (0, C2p - C2)).reshape(1, C2p).astype(jnp.float32)

    # ---- generation-aware VMEM sizing ----
    vmem_cap = _vmem_capacity_bytes()
    if vmem_limit_bytes is None:
        vmem_limit_bytes = min(vmem_cap * 3 // 4, 112 * 1024 * 1024)
    if vmem_budget_bytes is None:
        vmem_budget_bytes = vmem_limit_bytes // 2

    per_b = _per_batch_vmem_bytes(L, Cin, C1p, C2p, pad1, pad2)
    fixed = 2 * ((K1 * _round_up(Cin, 16) * C1p + K2 * C1p * C2p) * 2
                 + 8 * (C1p + C2p) * 4)             # weights + biases (double-buffered)
    bt = max(1, min(B, (vmem_budget_bytes - fixed) // max(per_b, 1)))
    G = max(pl.cdiv(B, bt), min_grid_steps)
    if min_grid_steps > 1:
        G = _round_up(G, min_grid_steps)            # even G -> balanced TC work on v7x
    Bt = pl.cdiv(B, G)
    Bp = G * Bt

    xq = x
    if Bp != B:
        # Padded batch rows run through bias+ReLU and produce nonzero garbage; they are
        # sliced off below — keep that invariant if output handling changes.
        xq = jnp.pad(xq, ((0, Bp - B), (0, 0), (0, 0)))

    kernel = functools.partial(_cnn_kernel, Bt=Bt, L=L, K1=K1, K2=K2,
                               pad1=pad1, pad2=pad2)

    flops = 2 * Bp * L * (K1 * Cin * C1p + K2 * C1p * C2p)
    bytes_accessed = (Bp * L * Cin * 4
                      + (K1 * Cin * C1p + K2 * C1p * C2p) * 2
                      + (C1p + C2p) * 4
                      + Bp * C2p * 4)

    out = pl.pallas_call(
        kernel,
        out_shape=jax.ShapeDtypeStruct((G, Bt, C2p), jnp.float32),
        grid_spec=pltpu.PrefetchScalarGridSpec(
            num_scalar_prefetch=0,
            grid=(G,),
            in_specs=[
                pl.BlockSpec((Bt, L, Cin), lambda g: (g, 0, 0)),
                pl.BlockSpec((K1, Cin, C1p), lambda g: (0, 0, 0)),
                pl.BlockSpec((1, C1p), lambda g: (0, 0)),
                pl.BlockSpec((K2, C1p, C2p), lambda g: (0, 0, 0)),
                pl.BlockSpec((1, C2p), lambda g: (0, 0)),
            ],
            out_specs=pl.BlockSpec((1, Bt, C2p), lambda g: (g, 0, 0)),
            scratch_shapes=[
                pltpu.VMEM((Bt, L + 2 * pad1, Cin), compute_dtype),
                pltpu.VMEM((Bt, L + 2 * pad2, C1p), compute_dtype),
            ],
        ),
        compiler_params=pltpu.CompilerParams(
            dimension_semantics=("parallel",),
            vmem_limit_bytes=int(vmem_limit_bytes)),
        cost_estimate=pl.CostEstimate(flops=flops, transcendentals=0,
                                      bytes_accessed=bytes_accessed),
    )(xq, w1_taps, b1_mat, w2_taps, b2_mat)

    return out.reshape(Bp, C2p)[:B, :C2]


def _reference_forward(x, params, kernels, *, compute_dtype=jnp.bfloat16, eps=1e-5):
    """Pure-JAX reference with the same eval-mode BN fold and bf16 casts."""
    (w1, bias1, g1, beta1), (w2, bias2, g2, beta2) = params
    K1, K2 = kernels

    def conv_bn_relu(h, w, bias, gamma, beta, K):
        pad = K // 2
        s = gamma / jnp.sqrt(1.0 + eps)
        wk = jnp.transpose(w * s[:, None, None], (2, 1, 0)).astype(compute_dtype)
        b = bias * s + beta
        hp = jnp.pad(h.astype(compute_dtype), ((0, 0), (pad, pad), (0, 0)))
        L = h.shape[1]
        out = sum(jnp.einsum("blc,cd->bld", hp[:, k:k + L, :], wk[k],
                             preferred_element_type=jnp.float32)
                  for k in range(K)) + b
        return jnp.maximum(out, 0.0)

    h1 = conv_bn_relu(x, w1, bias1, g1, beta1, K1)
    h2 = conv_bn_relu(h1, w2, bias2, g2, beta2, K2)
    return jnp.max(h2, axis=1)


if __name__ == "__main__":
    # Small, module-consistent shapes: (B, L, feat_size) -> (B, filters[1]).
    B, L = 2, 16
    feat_size = 8
    filters = (16, 32)
    kernels = (3, 5)
    dropout = 0.1  # identity in eval mode

    key = jax.random.PRNGKey(0)
    keys = jax.random.split(key, 9)

    x = jax.random.normal(keys[0], (B, L, feat_size), dtype=jnp.float32)

    w1 = 0.1 * jax.random.normal(keys[1], (filters[0], feat_size, kernels[0]), jnp.float32)
    bias1 = 0.1 * jax.random.normal(keys[2], (filters[0],), jnp.float32)
    g1 = 1.0 + 0.1 * jax.random.normal(keys[3], (filters[0],), jnp.float32)
    beta1 = 0.1 * jax.random.normal(keys[4], (filters[0],), jnp.float32)

    w2 = 0.1 * jax.random.normal(keys[5], (filters[1], filters[0], kernels[1]), jnp.float32)
    bias2 = 0.1 * jax.random.normal(keys[6], (filters[1],), jnp.float32)
    g2 = 1.0 + 0.1 * jax.random.normal(keys[7], (filters[1],), jnp.float32)
    beta2 = 0.1 * jax.random.normal(keys[8], (filters[1],), jnp.float32)

    params = ((w1, bias1, g1, beta1), (w2, bias2, g2, beta2))

    out = cnn_model_forward(x, params, kernels)
    out = jax.block_until_ready(out)

    ref = _reference_forward(x, params, kernels)
    assert out.shape == (B, filters[1])
    # bf16 weights/activations with f32 accumulation in both kernel and reference;
    # tolerance covers summation-order / bf16 rounding differences.
    assert jnp.allclose(out, ref, atol=5e-3, rtol=5e-3), "mismatch vs JAX reference"

    print("KERNEL_OK")
</pallas_src>

<mosaic_0001>
module attributes {stable_mosaic.version = 11 : i64} {
  func.func @_cnn_kernel(%arg0: i32, %arg1: memref<2x16x8xf32, #tpu.memory_space<vmem>>, %arg2: memref<3x8x128xbf16, #tpu.memory_space<vmem>>, %arg3: memref<1x128xf32, #tpu.memory_space<vmem>>, %arg4: memref<5x128x128xbf16, #tpu.memory_space<vmem>>, %arg5: memref<1x128xf32, #tpu.memory_space<vmem>>, %arg6: memref<1x2x128xf32, #tpu.memory_space<vmem>>, %arg7: memref<2x18x8xbf16, #tpu.memory_space<vmem>>, %arg8: memref<2x20x128xbf16, #tpu.memory_space<vmem>>) attributes {dimension_semantics = [#tpu.dimension_semantics<parallel>], iteration_bounds = array<i64: 1>, scalar_prefetch = 0 : i64, scratch_operands = 2 : i64, tpu.core_type = #tpu.core_type<tc>, window_params = [{transform_indices = @transform_0, window_bounds = array<i64: 2, 16, 8>}, {pipeline_mode = #tpu.pipeline_mode<synchronous>, transform_indices = @transform_1, window_bounds = array<i64: 3, 8, 128>}, {pipeline_mode = #tpu.pipeline_mode<synchronous>, transform_indices = @transform_2, window_bounds = array<i64: 1, 128>}, {pipeline_mode = #tpu.pipeline_mode<synchronous>, transform_indices = @transform_3, window_bounds = array<i64: 5, 128, 128>}, {pipeline_mode = #tpu.pipeline_mode<synchronous>, transform_indices = @transform_4, window_bounds = array<i64: 1, 128>}, {transform_indices = @transform_5, window_bounds = array<i64: 1, 2, 128>}]} {
    %cst = arith.constant 0.000000e+00 : bf16
    %0 = vector.broadcast %cst : bf16 to vector<2x1x8xbf16>
    %c0 = arith.constant 0 : index
    %c0_0 = arith.constant 0 : index
    %c0_1 = arith.constant 0 : index
    %1 = vector.load %arg7[%c0, %c0_0, %c0_1] : memref<2x18x8xbf16, #tpu.memory_space<vmem>>, vector<2x1x8xbf16>
    tpu.vector_store %arg7[%c0, %c0_0, %c0_1], %0 {strides = array<i32>} : memref<2x18x8xbf16, #tpu.memory_space<vmem>>, vector<2x1x8xbf16>,
    %cst_2 = arith.constant 0.000000e+00 : bf16
    %2 = vector.broadcast %cst_2 : bf16 to vector<2x1x8xbf16>
    %c0_3 = arith.constant 0 : index
    %c17 = arith.constant 17 : index
    %c0_4 = arith.constant 0 : index
    %3 = vector.load %arg7[%c0_3, %c17, %c0_4] : memref<2x18x8xbf16, #tpu.memory_space<vmem>>, vector<2x1x8xbf16>
    tpu.vector_store %arg7[%c0_3, %c17, %c0_4], %2 {strides = array<i32>} : memref<2x18x8xbf16, #tpu.memory_space<vmem>>, vector<2x1x8xbf16>,
    %c0_5 = arith.constant 0 : index
    %c0_6 = arith.constant 0 : index
    %c0_7 = arith.constant 0 : index
    %4 = vector.load %arg1[%c0_5, %c0_6, %c0_7] : memref<2x16x8xf32, #tpu.memory_space<vmem>>, vector<2x16x8xf32>
    %5 = arith.truncf %4 : vector<2x16x8xf32> to vector<2x16x8xbf16>
    %c0_8 = arith.constant 0 : index
    %c1 = arith.constant 1 : index
    %c0_9 = arith.constant 0 : index
    %6 = vector.load %arg7[%c0_8, %c1, %c0_9] : memref<2x18x8xbf16, #tpu.memory_space<vmem>>, vector<2x16x8xbf16>
    tpu.vector_store %arg7[%c0_8, %c1, %c0_9], %5 {strides = array<i32>} : memref<2x18x8xbf16, #tpu.memory_space<vmem>>, vector<2x16x8xbf16>,
    %c0_10 = arith.constant 0 : index
    %c0_11 = arith.constant 0 : index
    %c0_12 = arith.constant 0 : index
    %7 = vector.load %arg7[%c0_10, %c0_11, %c0_12] : memref<2x18x8xbf16, #tpu.memory_space<vmem>>, vector<2x16x8xbf16>
    %8 = vector.shape_cast %7 : vector<2x16x8xbf16> to vector<32x8xbf16>
    %c0_13 = arith.constant 0 : index
    %c0_14 = arith.constant 0 : index
    %c0_15 = arith.constant 0 : index
    %9 = vector.load %arg2[%c0_13, %c0_14, %c0_15] : memref<3x8x128xbf16, #tpu.memory_space<vmem>>, vector<1x8x128xbf16>
    %10 = vector.shape_cast %9 : vector<1x8x128xbf16> to vector<8x128xbf16>
    %cst_16 = arith.constant dense<0.000000e+00> : vector<32x128xf32>
    %11 = tpu.matmul %8, %10, %cst_16 {dimension_numbers = #tpu.dot_dimension_numbers<[1], [0], [0], [1], [0, 0, 1, 1], [], []>} : vector<32x8xbf16>, vector<8x128xbf16>, vector<32x128xf32> -> vector<32x128xf32>
    %c0_17 = arith.constant 0 : index
    %c1_18 = arith.constant 1 : index
    %c0_19 = arith.constant 0 : index
    %12 = vector.load %arg7[%c0_17, %c1_18, %c0_19] : memref<2x18x8xbf16, #tpu.memory_space<vmem>>, vector<2x16x8xbf16>
    %13 = vector.shape_cast %12 : vector<2x16x8xbf16> to vector<32x8xbf16>
    %c1_20 = arith.constant 1 : index
    %c0_21 = arith.constant 0 : index
    %c0_22 = arith.constant 0 : index
    %14 = vector.load %arg2[%c1_20, %c0_21, %c0_22] : memref<3x8x128xbf16, #tpu.memory_space<vmem>>, vector<1x8x128xbf16>
    %15 = vector.shape_cast %14 : vector<1x8x128xbf16> to vector<8x128xbf16>
    %cst_23 = arith.constant dense<0.000000e+00> : vector<32x128xf32>
    %16 = tpu.matmul %13, %15, %cst_23 {dimension_numbers = #tpu.dot_dimension_numbers<[1], [0], [0], [1], [0, 0, 1, 1], [], []>} : vector<32x8xbf16>, vector<8x128xbf16>, vector<32x128xf32> -> vector<32x128xf32>
    %17 = arith.addf %11, %16 : vector<32x128xf32>
    %c0_24 = arith.constant 0 : index
    %c2 = arith.constant 2 : index
    %c0_25 = arith.constant 0 : index
    %18 = vector.load %arg7[%c0_24, %c2, %c0_25] : memref<2x18x8xbf16, #tpu.memory_space<vmem>>, vector<2x16x8xbf16>
    %19 = vector.shape_cast %18 : vector<2x16x8xbf16> to vector<32x8xbf16>
    %c2_26 = arith.constant 2 : index
    %c0_27 = arith.constant 0 : index
    %c0_28 = arith.constant 0 : index
    %20 = vector.load %arg2[%c2_26, %c0_27, %c0_28] : memref<3x8x128xbf16, #tpu.memory_space<vmem>>, vector<1x8x128xbf16>
    %21 = vector.shape_cast %20 : vector<1x8x128xbf16> to vector<8x128xbf16>
    %cst_29 = arith.constant dense<0.000000e+00> : vector<32x128xf32>
    %22 = tpu.matmul %19, %21, %cst_29 {dimension_numbers = #tpu.dot_dimension_numbers<[1], [0], [0], [1], [0, 0, 1, 1], [], []>} : vector<32x8xbf16>, vector<8x128xbf16>, vector<32x128xf32> -> vector<32x128xf32>
    %23 = arith.addf %17, %22 : vector<32x128xf32>
    %c0_30 = arith.constant 0 : index
    %c0_31 = arith.constant 0 : index
    %24 = vector.load %arg3[%c0_30, %c0_31] : memref<1x128xf32, #tpu.memory_space<vmem>>, vector<1x128xf32>
    %25 = vector.broadcast %24 : vector<1x128xf32> to vector<32x128xf32>
    %26 = arith.addf %23, %25 : vector<32x128xf32>
    %cst_32 = arith.constant 0.000000e+00 : f32
    %27 = vector.broadcast %cst_32 : f32 to vector<32x128xf32>
    %28 = arith.maximumf %26, %27 : vector<32x128xf32>
    %cst_33 = arith.constant 0.000000e+00 : bf16
    %29 = vector.broadcast %cst_33 : bf16 to vector<2x2x128xbf16>
    %c0_34 = arith.constant 0 : index
    %c0_35 = arith.constant 0 : index
    %c0_36 = arith.constant 0 : index
    %30 = vector.load %arg8[%c0_34, %c0_35, %c0_36] : memref<2x20x128xbf16, #tpu.memory_space<vmem>>, vector<2x2x128xbf16>
    tpu.vector_store %arg8[%c0_34, %c0_35, %c0_36], %29 {strides = array<i32>} : memref<2x20x128xbf16, #tpu.memory_space<vmem>>, vector<2x2x128xbf16>,
    %cst_37 = arith.constant 0.000000e+00 : bf16
    %31 = vector.broadcast %cst_37 : bf16 to vector<2x2x128xbf16>
    %c0_38 = arith.constant 0 : index
    %c18 = arith.constant 18 : index
    %c0_39 = arith.constant 0 : index
    %32 = vector.load %arg8[%c0_38, %c18, %c0_39] : memref<2x20x128xbf16, #tpu.memory_space<vmem>>, vector<2x2x128xbf16>
    tpu.vector_store %arg8[%c0_38, %c18, %c0_39], %31 {strides = array<i32>} : memref<2x20x128xbf16, #tpu.memory_space<vmem>>, vector<2x2x128xbf16>,
    %33 = vector.shape_cast %28 : vector<32x128xf32> to vector<2x16x128xf32>
    %34 = arith.truncf %33 : vector<2x16x128xf32> to vector<2x16x128xbf16>
    %c0_40 = arith.constant 0 : index
    %c2_41 = arith.constant 2 : index
    %c0_42 = arith.constant 0 : index
    %35 = vector.load %arg8[%c0_40, %c2_41, %c0_42] : memref<2x20x128xbf16, #tpu.memory_space<vmem>>, vector<2x16x128xbf16>
    tpu.vector_store %arg8[%c0_40, %c2_41, %c0_42], %34 {strides = array<i32>} : memref<2x20x128xbf16, #tpu.memory_space<vmem>>, vector<2x16x128xbf16>,
    %c0_43 = arith.constant 0 : index
    %c0_44 = arith.constant 0 : index
    %c0_45 = arith.constant 0 : index
    %36 = vector.load %arg8[%c0_43, %c0_44, %c0_45] : memref<2x20x128xbf16, #tpu.memory_space<vmem>>, vector<2x16x128xbf16>
    %37 = vector.shape_cast %36 : vector<2x16x128xbf16> to vector<32x128xbf16>
    %c0_46 = arith.constant 0 : index
    %c0_47 = arith.constant 0 : index
    %c0_48 = arith.constant 0 : index
    %38 = vector.load %arg4[%c0_46, %c0_47, %c0_48] : memref<5x128x128xbf16, #tpu.memory_space<vmem>>, vector<1x128x128xbf16>
    %39 = vector.shape_cast %38 : vector<1x128x128xbf16> to vector<128x128xbf16>
    %cst_49 = arith.constant dense<0.000000e+00> : vector<32x128xf32>
    %40 = tpu.matmul %37, %39, %cst_49 {dimension_numbers = #tpu.dot_dimension_numbers<[1], [0], [0], [1], [0, 0, 1, 1], [], []>} : vector<32x128xbf16>, vector<128x128xbf16>, vector<32x128xf32> -> vector<32x128xf32>
    %c0_50 = arith.constant 0 : index
    %c1_51 = arith.constant 1 : index
    %c0_52 = arith.constant 0 : index
    %41 = vector.load %arg8[%c0_50, %c1_51, %c0_52] : memref<2x20x128xbf16, #tpu.memory_space<vmem>>, vector<2x16x128xbf16>
    %42 = vector.shape_cast %41 : vector<2x16x128xbf16> to vector<32x128xbf16>
    %c1_53 = arith.constant 1 : index
    %c0_54 = arith.constant 0 : index
    %c0_55 = arith.constant 0 : index
    %43 = vector.load %arg4[%c1_53, %c0_54, %c0_55] : memref<5x128x128xbf16, #tpu.memory_space<vmem>>, vector<1x128x128xbf16>
    %44 = vector.shape_cast %43 : vector<1x128x128xbf16> to vector<128x128xbf16>
    %cst_56 = arith.constant dense<0.000000e+00> : vector<32x128xf32>
    %45 = tpu.matmul %42, %44, %cst_56 {dimension_numbers = #tpu.dot_dimension_numbers<[1], [0], [0], [1], [0, 0, 1, 1], [], []>} : vector<32x128xbf16>, vector<128x128xbf16>, vector<32x128xf32> -> vector<32x128xf32>
    %46 = arith.addf %40, %45 : vector<32x128xf32>
    %c0_57 = arith.constant 0 : index
    %c2_58 = arith.constant 2 : index
    %c0_59 = arith.constant 0 : index
    %47 = vector.load %arg8[%c0_57, %c2_58, %c0_59] : memref<2x20x128xbf16, #tpu.memory_space<vmem>>, vector<2x16x128xbf16>
    %48 = vector.shape_cast %47 : vector<2x16x128xbf16> to vector<32x128xbf16>
    %c2_60 = arith.constant 2 : index
    %c0_61 = arith.constant 0 : index
    %c0_62 = arith.constant 0 : index
    %49 = vector.load %arg4[%c2_60, %c0_61, %c0_62] : memref<5x128x128xbf16, #tpu.memory_space<vmem>>, vector<1x128x128xbf16>
    %50 = vector.shape_cast %49 : vector<1x128x128xbf16> to vector<128x128xbf16>
    %cst_63 = arith.constant dense<0.000000e+00> : vector<32x128xf32>
    %51 = tpu.matmul %48, %50, %cst_63 {dimension_numbers = #tpu.dot_dimension_numbers<[1], [0], [0], [1], [0, 0, 1, 1], [], []>} : vector<32x128xbf16>, vector<128x128xbf16>, vector<32x128xf32> -> vector<32x128xf32>
    %52 = arith.addf %46, %51 : vector<32x128xf32>
    %c0_64 = arith.constant 0 : index
    %c3 = arith.constant 3 : index
    %c0_65 = arith.constant 0 : index
    %53 = vector.load %arg8[%c0_64, %c3, %c0_65] : memref<2x20x128xbf16, #tpu.memory_space<vmem>>, vector<2x16x128xbf16>
    %54 = vector.shape_cast %53 : vector<2x16x128xbf16> to vector<32x128xbf16>
    %c3_66 = arith.constant 3 : index
    %c0_67 = arith.constant 0 : index
    %c0_68 = arith.constant 0 : index
    %55 = vector.load %arg4[%c3_66, %c0_67, %c0_68] : memref<5x128x128xbf16, #tpu.memory_space<vmem>>, vector<1x128x128xbf16>
    %56 = vector.shape_cast %55 : vector<1x128x128xbf16> to vector<128x128xbf16>
    %cst_69 = arith.constant dense<0.000000e+00> : vector<32x128xf32>
    %57 = tpu.matmul %54, %56, %cst_69 {dimension_numbers = #tpu.dot_dimension_numbers<[1], [0], [0], [1], [0, 0, 1, 1], [], []>} : vector<32x128xbf16>, vector<128x128xbf16>, vector<32x128xf32> -> vector<32x128xf32>
    %58 = arith.addf %52, %57 : vector<32x128xf32>
    %c0_70 = arith.constant 0 : index
    %c4 = arith.constant 4 : index
    %c0_71 = arith.constant 0 : index
    %59 = vector.load %arg8[%c0_70, %c4, %c0_71] : memref<2x20x128xbf16, #tpu.memory_space<vmem>>, vector<2x16x128xbf16>
    %60 = vector.shape_cast %59 : vector<2x16x128xbf16> to vector<32x128xbf16>
    %c4_72 = arith.constant 4 : index
    %c0_73 = arith.constant 0 : index
    %c0_74 = arith.constant 0 : index
    %61 = vector.load %arg4[%c4_72, %c0_73, %c0_74] : memref<5x128x128xbf16, #tpu.memory_space<vmem>>, vector<1x128x128xbf16>
    %62 = vector.shape_cast %61 : vector<1x128x128xbf16> to vector<128x128xbf16>
    %cst_75 = arith.constant dense<0.000000e+00> : vector<32x128xf32>
    %63 = tpu.matmul %60, %62, %cst_75 {dimension_numbers = #tpu.dot_dimension_numbers<[1], [0], [0], [1], [0, 0, 1, 1], [], []>} : vector<32x128xbf16>, vector<128x128xbf16>, vector<32x128xf32> -> vector<32x128xf32>
    %64 = arith.addf %58, %63 : vector<32x128xf32>
    %c0_76 = arith.constant 0 : index
    %c0_77 = arith.constant 0 : index
    %65 = vector.load %arg5[%c0_76, %c0_77] : memref<1x128xf32, #tpu.memory_space<vmem>>, vector<1x128xf32>
    %66 = vector.broadcast %65 : vector<1x128xf32> to vector<32x128xf32>
    %67 = arith.addf %64, %66 : vector<32x128xf32>
    %cst_78 = arith.constant 0.000000e+00 : f32
    %68 = vector.broadcast %cst_78 : f32 to vector<32x128xf32>
    %69 = arith.maximumf %67, %68 : vector<32x128xf32>
    %70 = vector.shape_cast %69 : vector<32x128xf32> to vector<2x16x128xf32>
    %cst_79 = arith.constant dense<0xFF800000> : vector<2x128xf32>
    %71 = vector.multi_reduction <maximumf>, %70, %cst_79 [1] : vector<2x16x128xf32> to vector<2x128xf32>
    %c0_80 = arith.constant 0 : index
    %c0_81 = arith.constant 0 : index
    %c0_82 = arith.constant 0 : index
    %72 = vector.load %arg6[%c0_80, %c0_81, %c0_82] : memref<1x2x128xf32, #tpu.memory_space<vmem>>, vector<1x2x128xf32>
    %73 = vector.shape_cast %72 : vector<1x2x128xf32> to vector<2x128xf32>
    %74 = vector.shape_cast %71 : vector<2x128xf32> to vector<1x2x128xf32>
    tpu.vector_store %arg6[%c0_80, %c0_81, %c0_82], %74 {strides = array<i32>} : memref<1x2x128xf32, #tpu.memory_space<vmem>>, vector<1x2x128xf32>,
    return
  }
  func.func @transform_0(%arg0: i32) -> (i32, i32, i32) {
    %c0_i32 = arith.constant 0 : i32
    %c0_i32_0 = arith.constant 0 : i32
    %c0_i32_1 = arith.constant 0 : i32
    return %arg0, %c0_i32, %c0_i32_0 : i32, i32, i32
  }
  func.func @transform_1(%arg0: i32) -> (i32, i32, i32) {
    %c0_i32 = arith.constant 0 : i32
    %c0_i32_0 = arith.constant 0 : i32
    %c0_i32_1 = arith.constant 0 : i32
    %c0_i32_2 = arith.constant 0 : i32
    return %c0_i32, %c0_i32_0, %c0_i32_1 : i32, i32, i32
  }
  func.func @transform_2(%arg0: i32) -> (i32, i32) {
    %c0_i32 = arith.constant 0 : i32
    %c0_i32_0 = arith.constant 0 : i32
    %c0_i32_1 = arith.constant 0 : i32
    return %c0_i32, %c0_i32_0 : i32, i32
  }
  func.func @transform_3(%arg0: i32) -> (i32, i32, i32) {
    %c0_i32 = arith.constant 0 : i32
    %c0_i32_0 = arith.constant 0 : i32
    %c0_i32_1 = arith.constant 0 : i32
    %c0_i32_2 = arith.constant 0 : i32
    return %c0_i32, %c0_i32_0, %c0_i32_1 : i32, i32, i32
  }
  func.func @transform_4(%arg0: i32) -> (i32, i32) {
    %c0_i32 = arith.constant 0 : i32
    %c0_i32_0 = arith.constant 0 : i32
    %c0_i32_1 = arith.constant 0 : i32
    return %c0_i32, %c0_i32_0 : i32, i32
  }
  func.func @transform_5(%arg0: i32) -> (i32, i32, i32) {
    %c0_i32 = arith.constant 0 : i32
    %c0_i32_0 = arith.constant 0 : i32
    %c0_i32_1 = arith.constant 0 : i32
    return %arg0, %c0_i32, %c0_i32_0 : i32, i32, i32
  }
}

</mosaic_0001>

<llo_original>
// kernel: tpu_custom_call.1
$region0: #{tpu_custom_call.1}
  #allocation0 [shape = 'u32[]', space=smem, size = 0x4, offset = 0x4, fixed_abs, tag = 'smem constant byte address 0x4 - core index']
  #allocation1 [shape = 'u32[72,128]{1,0:T(1,128)}', space=vmem, size = 0x9000, scoped, tag = 'internal scratch']
  #allocation2 [shape = 'bf16[2,18,8]{2,1,0:T(8,128)(2,1)}', space=vmem, size = 0x3000, scoped, tag = 'scratch operand']
  #allocation3 [shape = 'bf16[2,20,128]{2,1,0:T(8,128)(2,1)}', space=vmem, size = 0x3000, scoped, tag = 'scratch operand']
  %s0 = inlined_call_operand.vmem [shape: f32[2,16,8], index: 0, kind: input, shape index: {}]
  %s1 = inlined_call_operand.vmem [shape: bf16[3,8,128], index: 1, kind: input, shape index: {}]
  %s2 = inlined_call_operand.vmem [shape: f32[1,128], index: 2, kind: input, shape index: {}]
  %s3 = inlined_call_operand.hbm [shape: bf16[5,128,128], index: 3, kind: input, shape index: {}]
  %s4 = inlined_call_operand.vmem [shape: f32[1,128], index: 4, kind: input, shape index: {}]
  %s5 = inlined_call_operand.hbm [shape: f32[1,2,128], index: 5, kind: output, shape index: {}]
  %s6 = sld [smem:[#allocation0]]
  $region34: #{tpu_custom_call.1} parent=0
    _
  %s8 = ssub.s32 1, %s6
  %s9 = scalar_select 0, %s8, %s6
  $region1: #{tpu_custom_call.1} parent=0
    #allocation4 [shape = 'u8[163840]{0}', space=vmem, size = 0x28000, scoped, tag = 'input window, operand 3, single buffered']
    #allocation5 [shape = 's32[1]{0}', space=sflag, size = 0x4, scoped, tag = 'scoped memory for tpu_custom_call.1']
    #allocation6 [shape = 's32[1]{0}', space=sflag, size = 0x4, scoped, tag = 'scoped memory for tpu_custom_call.1']
    #allocation7 [shape = 'u8[1024]{0}', space=vmem, size = 0x400, scoped, tag = 'output window, operand 0, single buffered']
    %10 = vsyncpa [#allocation5], 0
    %11 = vsyncpa [#allocation6], 0
    // Predicated region
    $region2: #{tpu_custom_call.1} parent=1 // pred_check
      _
    $region3: #{tpu_custom_call.1} parent=1 // pred_check_branch
      %13 = sbr.rel (0) target = $region5
    $region4: #{tpu_custom_call.1} parent=1 // pred_region
      _
    $region5: #{tpu_custom_call.1} parent=1 // pred_fallthru
      _
    // Predicated region
    $region6: #{tpu_custom_call.1} parent=1 // pred_check
      _
    $region7: #{tpu_custom_call.1} parent=1 // pred_check_branch
      %15 = sbr.rel (0) target = $region9
    $region8: #{tpu_custom_call.1} parent=1 // pred_region
      _
    $region9: #{tpu_custom_call.1} parent=1 // pred_fallthru
      _
    // Predicated region
    $region10: #{tpu_custom_call.1} parent=1 // pred_check
      _
    $region11: #{tpu_custom_call.1} parent=1 // pred_check_branch
      %17 = sbr.rel (0) target = $region13
    $region12: #{tpu_custom_call.1} parent=1 // pred_region
      _
    $region13: #{tpu_custom_call.1} parent=1 // pred_fallthru
      _
    // Predicated region
    $region14: #{tpu_custom_call.1} parent=1 // pred_check
      _
    $region15: #{tpu_custom_call.1} parent=1 // pred_check_branch
      %19 = sbr.rel (0) target = $region17
    $region16: #{tpu_custom_call.1} parent=1 // pred_region
      %21 = vsyncadd [#allocation5], 0
      %s22 = sshll.u32 %s3, 4
      %s23 = int_to_ptr.hbm [resolvable:$true] %s22
      %s24 = sshll.u32 [#allocation4], 4
      %s25 = int_to_ptr.vmem [resolvable:$true] %s24
      %30 = dma.hbm_to_vmem [thread:$0]  %s23, 5120, %s25, [#allocation5], 64, 64, 4
    $region17: #{tpu_custom_call.1} parent=1 // pred_fallthru
      _
    // Predicated region
    $region18: #{tpu_custom_call.1} parent=1 // pred_check
      _
    $region19: #{tpu_custom_call.1} parent=1 // pred_check_branch
      %32 = sbr.rel (0) target = $region21
    $region20: #{tpu_custom_call.1} parent=1 // pred_region
      _
    $region21: #{tpu_custom_call.1} parent=1 // pred_fallthru
      _
    // Predicated region
    $region22: #{tpu_custom_call.1} parent=1 // pred_check
      _
    $region23: #{tpu_custom_call.1} parent=1 // pred_check_branch
      %34 = sbr.rel (0) target = $region25
    $region24: #{tpu_custom_call.1} parent=1 // pred_region
      %36 = dma.done [#allocation5], 5120
    $region25: #{tpu_custom_call.1} parent=1 // pred_fallthru
      _
    %vm38 = vcmask 57344
    %vm39 = vsmask.f32 256
    %vm40 = vmand %vm38, %vm39
    %v41 = vld [vmem:[#allocation2] sm:$0x1]
    %v42 = vsel %vm40, 0, %v41
    %43 = vst [vmem:[#allocation2] sm:$0x1] %v42
    %v44 = vld [vmem:[#allocation2 + $0xc] sm:$0x1]
    %v45 = vsel %vm40, 0, %v44
    %46 = vst [vmem:[#allocation2 + $0xc] sm:$0x1] %v45
    %vm47 = vsmask.f32 7938
    %vm48 = vmand %vm38, %vm47
    %v49 = vld [vmem:[#allocation2 + $0x8] sm:$0x1]
    %v50 = vsel %vm48, 0, %v49
    %51 = vst [vmem:[#allocation2 + $0x8] sm:$0x1] %v50
    %v52 = vld [vmem:[#allocation2 + $0x14] sm:$0x1]
    %v53 = vsel %vm48, 0, %v52
    %54 = vst [vmem:[#allocation2 + $0x14] sm:$0x1] %v53
    %v55 = vld [vmem:[%s0] sm:$0xff]
    %v56 = vld [vmem:[%s0 + $0x8] sm:$0xff]
    %v57 = vld [vmem:[%s0 + $0x10] sm:$0xff]
    %v58 = vld [vmem:[%s0 + $0x18] sm:$0xff]
    %v59 = vpack.c.bf16 %v55, %v55
    %v60 = vpack.c.bf16 %v56, %v56
    %v61 = vpack.c.bf16 %v57, %v57
    %v62 = vpack.c.bf16 %v58, %v58
    %vm63 = vsmask.f32 4368
    %vm64 = vmor %vm39, %vm63
    %v66 = vshrl.u32 %v59, 16
    %v68 = vrot.slane %v66, 7
    %v69 = vshll.u32 %v59, 16
    %v71 = vor.u32 %v68, %v69
    %v72 = vrot.slane %v68, 4
    %v74 = vshrl.u32 %v60, 16
    %v76 = vrot.slane %v74, 7
    %v77 = vshll.u32 %v60, 16
    %v79 = vor.u32 %v76, %v77
    %v80 = vsel %vm64, %v72, %v79
    %v81 = vrot.slane %v76, 4
    %v83 = vshrl.u32 %v61, 16
    %v85 = vrot.slane %v83, 7
    %v86 = vshll.u32 %v61, 16
    %v88 = vor.u32 %v85, %v86
    %v89 = vrot.slane %v85, 4
    %v91 = vshrl.u32 %v62, 16
    %v93 = vrot.slane %v91, 7
    %v94 = vshll.u32 %v62, 16
    %v96 = vor.u32 %v93, %v94
    %v97 = vsel %vm64, %v89, %v96
    %v98 = vrot.slane %v93, 4
    %vm105 = vcmask 60416
    %vm106 = vmand %vm105, %vm47
    %v107 = vld [vmem:[#allocation2] sm:$0xf]
    %v108 = vsel %vm106, %v71, %v107
    %109 = vst [vmem:[#allocation2] sm:$0xf] %v108
    %vm110 = vcmask 60416
    %111 = vst.msk [vmem:[#allocation2 + $0x4] sm:$0xf] %vm110, %v80
    %v112 = vld [vmem:[#allocation2 + $0x8] sm:$0x1]
    %v113 = vsel %vm40, %v81, %v112
    %114 = vst [vmem:[#allocation2 + $0x8] sm:$0x1] %v113
    %v115 = vld [vmem:[#allocation2 + $0xc] sm:$0xf]
    %v116 = vsel %vm106, %v88, %v115
    %117 = vst [vmem:[#allocation2 + $0xc] sm:$0xf] %v116
    %118 = vst.msk [vmem:[#allocation2 + $0x10] sm:$0xf] %vm110, %v97
    %v119 = vld [vmem:[#allocation2 + $0x14] sm:$0x1]
    %v120 = vsel %vm40, %v98, %v119
    %121 = vst [vmem:[#allocation2 + $0x14] sm:$0x1] %v120
    %v122 = vld [vmem:[#allocation2] sm:$0xf]
    %v123 = vld [vmem:[#allocation2 + $0x4] sm:$0xf]
    %v124 = vld [vmem:[#allocation2 + $0xc] sm:$0xf]
    %v125 = vld [vmem:[#allocation2 + $0x10] sm:$0xf]
    %v126 = vld [vmem:[%s1] sm:$0xf]
    %v127 = vld [vmem:[#allocation2 + $0x8] sm:$0x1]
    %v128 = vld [vmem:[#allocation2 + $0x14] sm:$0x1]
    %vm129 = vsmask.f32 3328
    %vm130 = vsmask.f32 7440
    %vm131 = vmor %vm129, %vm130
    %v133 = vshrl.u32 %v122, 16
    %v135 = vrot.slane %v133, 4
    %v136 = vshll.u32 %v122, 16
    %v138 = vrot.slane %v136, 5
    %v139 = vor.u32 %v135, %v138
    %v140 = vrot.slane %v139, 4
    %v142 = vshll.u32 %v123, 16
    %v144 = vrot.slane %v142, 5
    %v145 = vsel %vm131, %v140, %v144
    %v146 = vshrl.u32 %v123, 16
    %v148 = vrot.slane %v146, 4
    %v149 = vor.u32 %v148, %v144
    %v150 = vrot.slane %v149, 4
    %v152 = vshll.u32 %v127, 16
    %v154 = vrot.slane %v152, 5
    %v155 = vsel %vm131, %v150, %v154
    %v157 = vshrl.u32 %v124, 16
    %v159 = vrot.slane %v157, 4
    %v160 = vshll.u32 %v124, 16
    %v162 = vrot.slane %v160, 5
    %v163 = vor.u32 %v159, %v162
    %v164 = vrot.slane %v163, 4
    %v166 = vshll.u32 %v125, 16
    %v168 = vrot.slane %v166, 5
    %v169 = vsel %vm131, %v164, %v168
    %v170 = vshrl.u32 %v125, 16
    %v172 = vrot.slane %v170, 4
    %v173 = vor.u32 %v172, %v168
    %v174 = vrot.slane %v173, 4
    %v176 = vshll.u32 %v128, 16
    %v178 = vrot.slane %v176, 5
    %v179 = vsel %vm131, %v174, %v178
    %s180 = scalar_lea.vmem %s1, 4
    %v181 = vld [vmem:[%s180] sm:$0xf]
    %v182 = vunpack.c.l.b16 %v145
    %v183 = vunpack.c.l.b16 %v155
    %v184 = vunpack.c.l.b16 %v169
    %v185 = vunpack.c.l.b16 %v179
    %v186 = vpack.c.b16 %v183, %v182
    %v187 = vpack.c.b16 %v185, %v184
    %vm188 = vcmask 64512
    %v190 = vsel %vm188, %v186, 0
    %v193 = vsel %vm188, %v187, 0
    %vm195 = vcmask 1043456
    %v197 = vsel %vm195, %v181, 0
    %199 = vmatpush.bf16.msra.mxu0 0
    %200 = vmatpush.bf16.msra.mxu0 0
    %201 = vmatpush.bf16.msra.mxu0 0
    %202 = vmatpush.bf16.msra.mxu0 0
    %203 = vmatpush.bf16.msra.mxu0 0
    %204 = vmatpush.bf16.msra.mxu0 0
    %205 = vmatpush.bf16.msra.mxu0 0
    %206 = vmatpush.bf16.msra.mxu0 %v197
    %207 = vmatmul.bf16.gmra.mxu0 %v190
    %v208 = vpop.f32.mrf.mxu0
    %v209 = vadd.f32 0.0, %v208
    %v210 = vpop.f32.mrf.mxu0
    %v211 = vadd.f32 0.0, %v210
    %212 = vmatmul.bf16.gmra.mxu0 %v193
    %v213 = vpop.f32.mrf.mxu0
    %v214 = vadd.f32 0.0, %v213
    %v215 = vpop.f32.mrf.mxu0
    %v216 = vadd.f32 0.0, %v215
    %217 = vdwg.mxu0
    %v222 = vunpack.c.l.b16 %v122
    %v223 = vunpack.c.l.b16 %v123
    %v224 = vunpack.c.l.b16 %v124
    %v225 = vunpack.c.l.b16 %v125
    %v226 = vpack.c.b16 %v223, %v222
    %v227 = vpack.c.b16 %v225, %v224
    %v229 = vsel %vm188, %v226, 0
    %v232 = vsel %vm188, %v227, 0
    %v235 = vsel %vm195, %v126, 0
    %237 = vmatpush.bf16.msra.mxu0 0
    %238 = vmatpush.bf16.msra.mxu0 0
    %239 = vmatpush.bf16.msra.mxu0 0
    %240 = vmatpush.bf16.msra.mxu0 0
    %241 = vmatpush.bf16.msra.mxu0 0
    %242 = vmatpush.bf16.msra.mxu0 0
    %243 = vmatpush.bf16.msra.mxu0 0
    %244 = vmatpush.bf16.msra.mxu0 %v235
    %245 = vmatmul.bf16.gmra.mxu0 %v229
    %v246 = vpop.f32.mrf.mxu0
    %v247 = vadd.f32 %v209, %v246
    %v248 = vpop.f32.mrf.mxu0
    %v249 = vadd.f32 %v211, %v248
    %250 = vmatmul.bf16.gmra.mxu0 %v232
    %v251 = vpop.f32.mrf.mxu0
    %v252 = vadd.f32 %v214, %v251
    %v253 = vpop.f32.mrf.mxu0
    %v254 = vadd.f32 %v216, %v253
    %255 = vdwg.mxu0
    %v256 = vld [vmem:[#allocation2] sm:$0xe]
    %v257 = vld [vmem:[#allocation2 + $0xc] sm:$0xe]
    %vm262 = vcmask 1042432
    %vm263 = vcmask 1046532
    %vm264 = vmor %vm262, %vm263
    %v265 = vrot.slane %v256, 5
    %v266 = vrot.slane %v265, 4
    %v267 = vrot.slane %v123, 5
    %v268 = vsel %vm264, %v266, %v267
    %v269 = vrot.slane %v267, 4
    %v270 = vrot.slane %v127, 5
    %v271 = vsel %vm264, %v269, %v270
    %v272 = vrot.slane %v257, 5
    %v273 = vrot.slane %v272, 4
    %v274 = vrot.slane %v125, 5
    %v275 = vsel %vm264, %v273, %v274
    %v276 = vrot.slane %v274, 4
    %v277 = vrot.slane %v128, 5
    %v278 = vsel %vm264, %v276, %v277
    %s279 = scalar_lea.vmem %s1, 8
    %v280 = vld [vmem:[%s279] sm:$0xf]
    %v281 = vunpack.c.l.b16 %v268
    %v282 = vunpack.c.l.b16 %v271
    %v283 = vunpack.c.l.b16 %v275
    %v284 = vunpack.c.l.b16 %v278
    %v285 = vpack.c.b16 %v282, %v281
    %v286 = vpack.c.b16 %v284, %v283
    %v288 = vsel %vm188, %v285, 0
    %v291 = vsel %vm188, %v286, 0
    %v294 = vsel %vm195, %v280, 0
    %296 = vmatpush.bf16.msra.mxu0 0
    %297 = vmatpush.bf16.msra.mxu0 0
    %298 = vmatpush.bf16.msra.mxu0 0
    %299 = vmatpush.bf16.msra.mxu0 0
    %300 = vmatpush.bf16.msra.mxu0 0
    %301 = vmatpush.bf16.msra.mxu0 0
    %302 = vmatpush.bf16.msra.mxu0 0
    %303 = vmatpush.bf16.msra.mxu0 %v294
    %304 = vmatmul.bf16.gmra.mxu0 %v288
    %v305 = vpop.f32.mrf.mxu0
    %v306 = vadd.f32 0.0, %v305
    %v307 = vpop.f32.mrf.mxu0
    %v308 = vadd.f32 0.0, %v307
    %309 = vmatmul.bf16.gmra.mxu0 %v291
    %v310 = vpop.f32.mrf.mxu0
    %v311 = vadd.f32 0.0, %v310
    %v312 = vpop.f32.mrf.mxu0
    %v313 = vadd.f32 0.0, %v312
    %314 = vdwg.mxu0
    %v315 = vadd.f32 %v247, %v306
    %v316 = vadd.f32 %v249, %v308
    %v317 = vadd.f32 %v252, %v311
    %v318 = vadd.f32 %v254, %v313
    %v319 = vld [vmem:[%s2] sm:$0x1]
    %v321 = vperm.slane %v319, 0
    %v323 = vadd.f32 %v315, %v321
    %v324 = vadd.f32 %v316, %v321
    %v325 = vadd.f32 %v317, %v321
    %v326 = vadd.f32 %v318, %v321
    %v327 = vmax.f32 %v323, 0.0
    %v328 = vmax.f32 %v324, 0.0
    %v329 = vmax.f32 %v325, 0.0
    %v330 = vmax.f32 %v326, 0.0
    %331 = vst [vmem:[#allocation3] sm:$0x1] 0
    %332 = vst [vmem:[#allocation3 + $0xc] sm:$0x1] 0
    %333 = vst [vmem:[#allocation3 + $0x8] sm:$0x2] 0
    %334 = vst [vmem:[#allocation3 + $0x14] sm:$0x2] 0
    %v335 = vpack.c.bf16 %v327, %v327
    %v336 = vpack.c.bf16 %v328, %v328
    %v337 = vpack.c.bf16 %v329, %v329
    %v338 = vpack.c.bf16 %v330, %v330
    %vm343 = vcmask 1040384
    %vm344 = vcmask 1044484
    %vm345 = vmor %vm343, %vm344
    %v346 = vrot.slane %v335, 7
    %v347 = vrot.slane %v346, 4
    %v348 = vrot.slane %v336, 7
    %v349 = vsel %vm345, %v347, %v348
    %v350 = vrot.slane %v348, 4
    %v351 = vrot.slane %v337, 7
    %v352 = vrot.slane %v351, 4
    %v353 = vrot.slane %v338, 7
    %v354 = vsel %vm345, %v352, %v353
    %v355 = vrot.slane %v353, 4
    %362 = vst [vmem:[#allocation3] sm:$0xe] %v346
    %363 = vst [vmem:[#allocation3 + $0x4] sm:$0xf] %v349
    %364 = vst [vmem:[#allocation3 + $0x8] sm:$0x1] %v350
    %365 = vst [vmem:[#allocation3 + $0xc] sm:$0xe] %v351
    %366 = vst [vmem:[#allocation3 + $0x10] sm:$0xf] %v354
    %367 = vst [vmem:[#allocation3 + $0x14] sm:$0x1] %v355
    %v368 = vld [vmem:[#allocation3] sm:$0xf]
    %v369 = vld [vmem:[#allocation3 + $0x4] sm:$0xf]
    %v370 = vld [vmem:[#allocation3 + $0xc] sm:$0xf]
    %v371 = vld [vmem:[#allocation3 + $0x10] sm:$0xf]
    %v372 = vld [vmem:[#allocation4] sm:$0xf]
    %v373 = vld [vmem:[#allocation4 + $0x4] sm:$0xf]
    %v374 = vld [vmem:[#allocation4 + $0x8] sm:$0xf]
    %v375 = vld [vmem:[#allocation4 + $0xc] sm:$0xf]
    %v376 = vld [vmem:[#allocation4 + $0x10] sm:$0xf]
    %v377 = vld [vmem:[#allocation4 + $0x14] sm:$0xf]
    %v378 = vld [vmem:[#allocation4 + $0x18] sm:$0xf]
    %v379 = vld [vmem:[#allocation4 + $0x1c] sm:$0xf]
    %v380 = vld [vmem:[#allocation4 + $0x20] sm:$0xf]
    %v381 = vld [vmem:[#allocation4 + $0x24] sm:$0xf]
    %v382 = vld [vmem:[#allocation4 + $0x28] sm:$0xf]
    %v383 = vld [vmem:[#allocation4 + $0x2c] sm:$0xf]
    %v384 = vld [vmem:[#allocation4 + $0x30] sm:$0xf]
    %v385 = vld [vmem:[#allocation4 + $0x34] sm:$0xf]
    %v386 = vld [vmem:[#allocation4 + $0x38] sm:$0xf]
    %v387 = vld [vmem:[#allocation4 + $0x3c] sm:$0xf]
    %v388 = vld [vmem:[#allocation3 + $0x8] sm:$0x1]
    %v389 = vld [vmem:[#allocation3 + $0x14] sm:$0x1]
    %v391 = vshrl.u32 %v368, 16
    %v393 = vrot.slane %v391, 4
    %v394 = vshll.u32 %v368, 16
    %v396 = vrot.slane %v394, 5
    %v397 = vor.u32 %v393, %v396
    %v398 = vrot.slane %v397, 4
    %v400 = vshll.u32 %v369, 16
    %v402 = vrot.slane %v400, 5
    %v403 = vsel %vm131, %v398, %v402
    %v404 = vshrl.u32 %v369, 16
    %v406 = vrot.slane %v404, 4
    %v407 = vor.u32 %v406, %v402
    %v408 = vrot.slane %v407, 4
    %v410 = vshll.u32 %v388, 16
    %v412 = vrot.slane %v410, 5
    %v413 = vsel %vm131, %v408, %v412
    %v415 = vshrl.u32 %v370, 16
    %v417 = vrot.slane %v415, 4
    %v418 = vshll.u32 %v370, 16
    %v420 = vrot.slane %v418, 5
    %v421 = vor.u32 %v417, %v420
    %v422 = vrot.slane %v421, 4
    %v424 = vshll.u32 %v371, 16
    %v426 = vrot.slane %v424, 5
    %v427 = vsel %vm131, %v422, %v426
    %v428 = vshrl.u32 %v371, 16
    %v430 = vrot.slane %v428, 4
    %v431 = vor.u32 %v430, %v426
    %v432 = vrot.slane %v431, 4
    %v434 = vshll.u32 %v389, 16
    %v436 = vrot.slane %v434, 5
    %v437 = vsel %vm131, %v432, %v436
    %s438 = scalar_lea.vmem [#allocation4], 64
    %v439 = vld [vmem:[%s438] sm:$0xf]
    %v440 = vld [vmem:[%s438 + $0x4] sm:$0xf]
    %v441 = vld [vmem:[%s438 + $0x8] sm:$0xf]
    %v442 = vld [vmem:[%s438 + $0xc] sm:$0xf]
    %v443 = vld [vmem:[%s438 + $0x10] sm:$0xf]
    %v444 = vld [vmem:[%s438 + $0x14] sm:$0xf]
    %v445 = vld [vmem:[%s438 + $0x18] sm:$0xf]
    %v446 = vld [vmem:[%s438 + $0x1c] sm:$0xf]
    %v447 = vld [vmem:[%s438 + $0x20] sm:$0xf]
    %v448 = vld [vmem:[%s438 + $0x24] sm:$0xf]
    %v449 = vld [vmem:[%s438 + $0x28] sm:$0xf]
    %v450 = vld [vmem:[%s438 + $0x2c] sm:$0xf]
    %v451 = vld [vmem:[%s438 + $0x30] sm:$0xf]
    %v452 = vld [vmem:[%s438 + $0x34] sm:$0xf]
    %v453 = vld [vmem:[%s438 + $0x38] sm:$0xf]
    %v454 = vld [vmem:[%s438 + $0x3c] sm:$0xf]
    %v455 = vunpack.c.l.b16 %v403
    %v456 = vunpack.c.l.b16 %v413
    %v457 = vunpack.c.l.b16 %v427
    %v458 = vunpack.c.l.b16 %v437
    %v459 = vpack.c.b16 %v456, %v455
    %v460 = vpack.c.b16 %v458, %v457
    %v479 = vunpack.c.l.b16 %v439
    %v480 = vunpack.c.l.b16 %v440
    %v481 = vunpack.c.l.b16 %v441
    %v482 = vunpack.c.l.b16 %v442
    %v483 = vunpack.c.l.b16 %v443
    %v484 = vunpack.c.l.b16 %v444
    %v485 = vunpack.c.l.b16 %v445
    %v486 = vunpack.c.l.b16 %v446
    %v487 = vunpack.c.l.b16 %v447
    %v488 = vunpack.c.l.b16 %v448
    %v489 = vunpack.c.l.b16 %v449
    %v490 = vunpack.c.l.b16 %v450
    %v491 = vunpack.c.l.b16 %v451
    %v492 = vunpack.c.l.b16 %v452
    %v493 = vunpack.c.l.b16 %v453
    %v494 = vunpack.c.l.b16 %v454
    %v495 = vpack.c.b16 %v480, %v479
    %v496 = vpack.c.b16 %v482, %v481
    %v497 = vpack.c.b16 %v484, %v483
    %v498 = vpack.c.b16 %v486, %v485
    %v499 = vpack.c.b16 %v488, %v487
    %v500 = vpack.c.b16 %v490, %v489
    %v501 = vpack.c.b16 %v492, %v491
    %v502 = vpack.c.b16 %v494, %v493
    %511 = vmatpush.bf16.msra.mxu0 %v502
    %512 = vmatpush.bf16.msra.mxu0 %v501
    %513 = vmatpush.bf16.msra.mxu0 %v500
    %514 = vmatpush.bf16.msra.mxu0 %v499
    %515 = vmatpush.bf16.msra.mxu0 %v498
    %516 = vmatpush.bf16.msra.mxu0 %v497
    %517 = vmatpush.bf16.msra.mxu0 %v496
    %518 = vmatpush.bf16.msra.mxu0 %v495
    %519 = vmatmul.bf16.gmra.mxu0 %v459
    %v520 = vpop.f32.mrf.mxu0
    %v521 = vadd.f32 0.0, %v520
    %v522 = vpop.f32.mrf.mxu0
    %v523 = vadd.f32 0.0, %v522
    %524 = vmatmul.bf16.gmra.mxu0 %v460
    %v525 = vpop.f32.mrf.mxu0
    %v526 = vadd.f32 0.0, %v525
    %v527 = vpop.f32.mrf.mxu0
    %v528 = vadd.f32 0.0, %v527
    %529 = vdwg.mxu0
    %v534 = vunpack.c.l.b16 %v368
    %v535 = vunpack.c.l.b16 %v369
    %v536 = vunpack.c.l.b16 %v370
    %v537 = vunpack.c.l.b16 %v371
    %v538 = vpack.c.b16 %v535, %v534
    %v539 = vpack.c.b16 %v537, %v536
    %v558 = vunpack.c.l.b16 %v372
    %v559 = vunpack.c.l.b16 %v373
    %v560 = vunpack.c.l.b16 %v374
    %v561 = vunpack.c.l.b16 %v375
    %v562 = vunpack.c.l.b16 %v376
    %v563 = vunpack.c.l.b16 %v377
    %v564 = vunpack.c.l.b16 %v378
    %v565 = vunpack.c.l.b16 %v379
    %v566 = vunpack.c.l.b16 %v380
    %v567 = vunpack.c.l.b16 %v381
    %v568 = vunpack.c.l.b16 %v382
    %v569 = vunpack.c.l.b16 %v383
    %v570 = vunpack.c.l.b16 %v384
    %v571 = vunpack.c.l.b16 %v385
    %v572 = vunpack.c.l.b16 %v386
    %v573 = vunpack.c.l.b16 %v387
    %v574 = vpack.c.b16 %v559, %v558
    %v575 = vpack.c.b16 %v561, %v560
    %v576 = vpack.c.b16 %v563, %v562
    %v577 = vpack.c.b16 %v565, %v564
    %v578 = vpack.c.b16 %v567, %v566
    %v579 = vpack.c.b16 %v569, %v568
    %v580 = vpack.c.b16 %v571, %v570
    %v581 = vpack.c.b16 %v573, %v572
    %590 = vmatpush.bf16.msra.mxu0 %v581
    %591 = vmatpush.bf16.msra.mxu0 %v580
    %592 = vmatpush.bf16.msra.mxu0 %v579
    %593 = vmatpush.bf16.msra.mxu0 %v578
    %594 = vmatpush.bf16.msra.mxu0 %v577
    %595 = vmatpush.bf16.msra.mxu0 %v576
    %596 = vmatpush.bf16.msra.mxu0 %v575
    %597 = vmatpush.bf16.msra.mxu0 %v574
    %598 = vmatmul.bf16.gmra.mxu0 %v538
    %v599 = vpop.f32.mrf.mxu0
    %v600 = vadd.f32 %v521, %v599
    %v601 = vpop.f32.mrf.mxu0
    %v602 = vadd.f32 %v523, %v601
    %603 = vmatmul.bf16.gmra.mxu0 %v539
    %v604 = vpop.f32.mrf.mxu0
    %v605 = vadd.f32 %v526, %v604
    %v606 = vpop.f32.mrf.mxu0
    %v607 = vadd.f32 %v528, %v606
    %608 = vdwg.mxu0
    %v609 = vld [vmem:[#allocation3] sm:$0xe]
    %v610 = vld [vmem:[#allocation3 + $0xc] sm:$0xe]
    %v615 = vrot.slane %v609, 5
    %v616 = vrot.slane %v615, 4
    %v617 = vrot.slane %v369, 5
    %v618 = vsel %vm264, %v616, %v617
    %v619 = vrot.slane %v617, 4
    %v620 = vrot.slane %v388, 5
    %v621 = vsel %vm264, %v619, %v620
    %v622 = vrot.slane %v610, 5
    %v623 = vrot.slane %v622, 4
    %v624 = vrot.slane %v371, 5
    %v625 = vsel %vm264, %v623, %v624
    %v626 = vrot.slane %v624, 4
    %v627 = vrot.slane %v389, 5
    %v628 = vsel %vm264, %v626, %v627
    %s629 = scalar_lea.vmem [#allocation4], 128
    %v630 = vld [vmem:[%s629] sm:$0xf]
    %v631 = vld [vmem:[%s629 + $0x4] sm:$0xf]
    %v632 = vld [vmem:[%s629 + $0x8] sm:$0xf]
    %v633 = vld [vmem:[%s629 + $0xc] sm:$0xf]
    %v634 = vld [vmem:[%s629 + $0x10] sm:$0xf]
    %v635 = vld [vmem:[%s629 + $0x14] sm:$0xf]
    %v636 = vld [vmem:[%s629 + $0x18] sm:$0xf]
    %v637 = vld [vmem:[%s629 + $0x1c] sm:$0xf]
    %v638 = vld [vmem:[%s629 + $0x20] sm:$0xf]
    %v639 = vld [vmem:[%s629 + $0x24] sm:$0xf]
    %v640 = vld [vmem:[%s629 + $0x28] sm:$0xf]
    %v641 = vld [vmem:[%s629 + $0x2c] sm:$0xf]
    %v642 = vld [vmem:[%s629 + $0x30] sm:$0xf]
    %v643 = vld [vmem:[%s629 + $0x34] sm:$0xf]
    %v644 = vld [vmem:[%s629 + $0x38] sm:$0xf]
    %v645 = vld [vmem:[%s629 + $0x3c] sm:$0xf]
    %v646 = vunpack.c.l.b16 %v618
    %v647 = vunpack.c.l.b16 %v621
    %v648 = vunpack.c.l.b16 %v625
    %v649 = vunpack.c.l.b16 %v628
    %v650 = vpack.c.b16 %v647, %v646
    %v651 = vpack.c.b16 %v649, %v648
    %v670 = vunpack.c.l.b16 %v630
    %v671 = vunpack.c.l.b16 %v631
    %v672 = vunpack.c.l.b16 %v632
    %v673 = vunpack.c.l.b16 %v633
    %v674 = vunpack.c.l.b16 %v634
    %v675 = vunpack.c.l.b16 %v635
    %v676 = vunpack.c.l.b16 %v636
    %v677 = vunpack.c.l.b16 %v637
    %v678 = vunpack.c.l.b16 %v638
    %v679 = vunpack.c.l.b16 %v639
    %v680 = vunpack.c.l.b16 %v640
    %v681 = vunpack.c.l.b16 %v641
    %v682 = vunpack.c.l.b16 %v642
    %v683 = vunpack.c.l.b16 %v643
    %v684 = vunpack.c.l.b16 %v644
    %v685 = vunpack.c.l.b16 %v645
    %v686 = vpack.c.b16 %v671, %v670
    %v687 = vpack.c.b16 %v673, %v672
    %v688 = vpack.c.b16 %v675, %v674
    %v689 = vpack.c.b16 %v677, %v676
    %v690 = vpack.c.b16 %v679, %v678
    %v691 = vpack.c.b16 %v681, %v680
    %v692 = vpack.c.b16 %v683, %v682
    %v693 = vpack.c.b16 %v685, %v684
    %702 = vmatpush.bf16.msra.mxu0 %v693
    %703 = vmatpush.bf16.msra.mxu0 %v692
    %704 = vmatpush.bf16.msra.mxu0 %v691
    %705 = vmatpush.bf16.msra.mxu0 %v690
    %706 = vmatpush.bf16.msra.mxu0 %v689
    %707 = vmatpush.bf16.msra.mxu0 %v688
    %708 = vmatpush.bf16.msra.mxu0 %v687
    %709 = vmatpush.bf16.msra.mxu0 %v686
    %710 = vmatmul.bf16.gmra.mxu0 %v650
    %v711 = vpop.f32.mrf.mxu0
    %v712 = vadd.f32 0.0, %v711
    %v713 = vpop.f32.mrf.mxu0
    %v714 = vadd.f32 0.0, %v713
    %715 = vmatmul.bf16.gmra.mxu0 %v651
    %v716 = vpop.f32.mrf.mxu0
    %v717 = vadd.f32 0.0, %v716
    %v718 = vpop.f32.mrf.mxu0
    %v719 = vadd.f32 0.0, %v718
    %720 = vdwg.mxu0
    %v721 = vadd.f32 %v600, %v712
    %v722 = vadd.f32 %v602, %v714
    %v723 = vadd.f32 %v605, %v717
    %v724 = vadd.f32 %v607, %v719
    %v725 = vld [vmem:[#allocation3 + $0x8] sm:$0x3]
    %v726 = vld [vmem:[#allocation3 + $0x14] sm:$0x3]
    %vm727 = vsmask.f32 2304
    %vm728 = vsmask.f32 6416
    %vm729 = vmor %vm727, %vm728
    %v731 = vshrl.u32 %v609, 16
    %v733 = vrot.slane %v731, 5
    %v734 = vshll.u32 %v609, 16
    %v736 = vrot.slane %v734, 6
    %v737 = vor.u32 %v733, %v736
    %v738 = vrot.slane %v737, 4
    %v739 = vrot.slane %v404, 5
    %v740 = vrot.slane %v400, 6
    %v741 = vor.u32 %v739, %v740
    %v742 = vsel %vm729, %v738, %v741
    %v743 = vrot.slane %v741, 4
    %v745 = vshrl.u32 %v725, 16
    %v747 = vrot.slane %v745, 5
    %v748 = vshll.u32 %v725, 16
    %v750 = vrot.slane %v748, 6
    %v751 = vor.u32 %v747, %v750
    %v752 = vsel %vm729, %v743, %v751
    %v754 = vshrl.u32 %v610, 16
    %v756 = vrot.slane %v754, 5
    %v757 = vshll.u32 %v610, 16
    %v759 = vrot.slane %v757, 6
    %v760 = vor.u32 %v756, %v759
    %v761 = vrot.slane %v760, 4
    %v762 = vrot.slane %v428, 5
    %v763 = vrot.slane %v424, 6
    %v764 = vor.u32 %v762, %v763
    %v765 = vsel %vm729, %v761, %v764
    %v766 = vrot.slane %v764, 4
    %v768 = vshrl.u32 %v726, 16
    %v770 = vrot.slane %v768, 5
    %v771 = vshll.u32 %v726, 16
    %v773 = vrot.slane %v771, 6
    %v774 = vor.u32 %v770, %v773
    %v775 = vsel %vm729, %v766, %v774
    %s776 = scalar_lea.vmem [#allocation4], 192
    %v777 = vld [vmem:[%s776] sm:$0xf]
    %v778 = vld [vmem:[%s776 + $0x4] sm:$0xf]
    %v779 = vld [vmem:[%s776 + $0x8] sm:$0xf]
    %v780 = vld [vmem:[%s776 + $0xc] sm:$0xf]
    %v781 = vld [vmem:[%s776 + $0x10] sm:$0xf]
    %v782 = vld [vmem:[%s776 + $0x14] sm:$0xf]
    %v783 = vld [vmem:[%s776 + $0x18] sm:$0xf]
    %v784 = vld [vmem:[%s776 + $0x1c] sm:$0xf]
    %v785 = vld [vmem:[%s776 + $0x20] sm:$0xf]
    %v786 = vld [vmem:[%s776 + $0x24] sm:$0xf]
    %v787 = vld [vmem:[%s776 + $0x28] sm:$0xf]
    %v788 = vld [vmem:[%s776 + $0x2c] sm:$0xf]
    %v789 = vld [vmem:[%s776 + $0x30] sm:$0xf]
    %v790 = vld [vmem:[%s776 + $0x34] sm:$0xf]
    %v791 = vld [vmem:[%s776 + $0x38] sm:$0xf]
    %v792 = vld [vmem:[%s776 + $0x3c] sm:$0xf]
    %v793 = vunpack.c.l.b16 %v742
    %v794 = vunpack.c.l.b16 %v752
    %v795 = vunpack.c.l.b16 %v765
    %v796 = vunpack.c.l.b16 %v775
    %v797 = vpack.c.b16 %v794, %v793
    %v798 = vpack.c.b16 %v796, %v795
    %v817 = vunpack.c.l.b16 %v777
    %v818 = vunpack.c.l.b16 %v778
    %v819 = vunpack.c.l.b16 %v779
    %v820 = vunpack.c.l.b16 %v780
    %v821 = vunpack.c.l.b16 %v781
    %v822 = vunpack.c.l.b16 %v782
    %v823 = vunpack.c.l.b16 %v783
    %v824 = vunpack.c.l.b16 %v784
    %v825 = vunpack.c.l.b16 %v785
    %v826 = vunpack.c.l.b16 %v786
    %v827 = vunpack.c.l.b16 %v787
    %v828 = vunpack.c.l.b16 %v788
    %v829 = vunpack.c.l.b16 %v789
    %v830 = vunpack.c.l.b16 %v790
    %v831 = vunpack.c.l.b16 %v791
    %v832 = vunpack.c.l.b16 %v792
    %v833 = vpack.c.b16 %v818, %v817
    %v834 = vpack.c.b16 %v820, %v819
    %v835 = vpack.c.b16 %v822, %v821
    %v836 = vpack.c.b16 %v824, %v823
    %v837 = vpack.c.b16 %v826, %v825
    %v838 = vpack.c.b16 %v828, %v827
    %v839 = vpack.c.b16 %v830, %v829
    %v840 = vpack.c.b16 %v832, %v831
    %849 = vmatpush.bf16.msra.mxu0 %v840
    %850 = vmatpush.bf16.msra.mxu0 %v839
    %851 = vmatpush.bf16.msra.mxu0 %v838
    %852 = vmatpush.bf16.msra.mxu0 %v837
    %853 = vmatpush.bf16.msra.mxu0 %v836
    %854 = vmatpush.bf16.msra.mxu0 %v835
    %855 = vmatpush.bf16.msra.mxu0 %v834
    %856 = vmatpush.bf16.msra.mxu0 %v833
    %857 = vmatmul.bf16.gmra.mxu0 %v797
    %v858 = vpop.f32.mrf.mxu0
    %v859 = vadd.f32 0.0, %v858
    %v860 = vpop.f32.mrf.mxu0
    %v861 = vadd.f32 0.0, %v860
    %862 = vmatmul.bf16.gmra.mxu0 %v798
    %v863 = vpop.f32.mrf.mxu0
    %v864 = vadd.f32 0.0, %v863
    %v865 = vpop.f32.mrf.mxu0
    %v866 = vadd.f32 0.0, %v865
    %867 = vdwg.mxu0
    %v868 = vadd.f32 %v721, %v859
    %v869 = vadd.f32 %v722, %v861
    %v870 = vadd.f32 %v723, %v864
    %v871 = vadd.f32 %v724, %v866
    %v872 = vld [vmem:[#allocation3] sm:$0xc]
    %v873 = vld [vmem:[#allocation3 + $0xc] sm:$0xc]
    %vm878 = vcmask 1041408
    %vm879 = vcmask 1045508
    %vm880 = vmor %vm878, %vm879
    %v881 = vrot.slane %v872, 6
    %v882 = vrot.slane %v881, 4
    %v883 = vrot.slane %v369, 6
    %v884 = vsel %vm880, %v882, %v883
    %v885 = vrot.slane %v883, 4
    %v886 = vrot.slane %v725, 6
    %v887 = vsel %vm880, %v885, %v886
    %v888 = vrot.slane %v873, 6
    %v889 = vrot.slane %v888, 4
    %v890 = vrot.slane %v371, 6
    %v891 = vsel %vm880, %v889, %v890
    %v892 = vrot.slane %v890, 4
    %v893 = vrot.slane %v726, 6
    %v894 = vsel %vm880, %v892, %v893
    %s895 = scalar_lea.vmem [#allocation4], 256
    %v896 = vld [vmem:[%s895] sm:$0xf]
    %v897 = vld [vmem:[%s895 + $0x4] sm:$0xf]
    %v898 = vld [vmem:[%s895 + $0x8] sm:$0xf]
    %v899 = vld [vmem:[%s895 + $0xc] sm:$0xf]
    %v900 = vld [vmem:[%s895 + $0x10] sm:$0xf]
    %v901 = vld [vmem:[%s895 + $0x14] sm:$0xf]
    %v902 = vld [vmem:[%s895 + $0x18] sm:$0xf]
    %v903 = vld [vmem:[%s895 + $0x1c] sm:$0xf]
    %v904 = vld [vmem:[%s895 + $0x20] sm:$0xf]
    %v905 = vld [vmem:[%s895 + $0x24] sm:$0xf]
    %v906 = vld [vmem:[%s895 + $0x28] sm:$0xf]
    %v907 = vld [vmem:[%s895 + $0x2c] sm:$0xf]
    %v908 = vld [vmem:[%s895 + $0x30] sm:$0xf]
    %v909 = vld [vmem:[%s895 + $0x34] sm:$0xf]
    %v910 = vld [vmem:[%s895 + $0x38] sm:$0xf]
    %v911 = vld [vmem:[%s895 + $0x3c] sm:$0xf]
    %v912 = vunpack.c.l.b16 %v884
    %v913 = vunpack.c.l.b16 %v887
    %v914 = vunpack.c.l.b16 %v891
    %v915 = vunpack.c.l.b16 %v894
    %v916 = vpack.c.b16 %v913, %v912
    %v917 = vpack.c.b16 %v915, %v914
    %v936 = vunpack.c.l.b16 %v896
    %v937 = vunpack.c.l.b16 %v897
    %v938 = vunpack.c.l.b16 %v898
    %v939 = vunpack.c.l.b16 %v899
    %v940 = vunpack.c.l.b16 %v900
    %v941 = vunpack.c.l.b16 %v901
    %v942 = vunpack.c.l.b16 %v902
    %v943 = vunpack.c.l.b16 %v903
    %v944 = vunpack.c.l.b16 %v904
    %v945 = vunpack.c.l.b16 %v905
    %v946 = vunpack.c.l.b16 %v906
    %v947 = vunpack.c.l.b16 %v907
    %v948 = vunpack.c.l.b16 %v908
    %v949 = vunpack.c.l.b16 %v909
    %v950 = vunpack.c.l.b16 %v910
    %v951 = vunpack.c.l.b16 %v911
    %v952 = vpack.c.b16 %v937, %v936
    %v953 = vpack.c.b16 %v939, %v938
    %v954 = vpack.c.b16 %v941, %v940
    %v955 = vpack.c.b16 %v943, %v942
    %v956 = vpack.c.b16 %v945, %v944
    %v957 = vpack.c.b16 %v947, %v946
    %v958 = vpack.c.b16 %v949, %v948
    %v959 = vpack.c.b16 %v951, %v950
    %968 = vmatpush.bf16.msra.mxu0 %v959
    %969 = vmatpush.bf16.msra.mxu0 %v958
    %970 = vmatpush.bf16.msra.mxu0 %v957
    %971 = vmatpush.bf16.msra.mxu0 %v956
    %972 = vmatpush.bf16.msra.mxu0 %v955
    %973 = vmatpush.bf16.msra.mxu0 %v954
    %974 = vmatpush.bf16.msra.mxu0 %v953
    %975 = vmatpush.bf16.msra.mxu0 %v952
    %976 = vmatmul.bf16.gmra.mxu0 %v916
    %v977 = vpop.f32.mrf.mxu0
    %v978 = vadd.f32 0.0, %v977
    %v979 = vpop.f32.mrf.mxu0
    %v980 = vadd.f32 0.0, %v979
    %981 = vmatmul.bf16.gmra.mxu0 %v917
    %v982 = vpop.f32.mrf.mxu0
    %v983 = vadd.f32 0.0, %v982
    %v984 = vpop.f32.mrf.mxu0
    %v985 = vadd.f32 0.0, %v984
    %986 = vdwg.mxu0
    %v987 = vadd.f32 %v868, %v978
    %v988 = vadd.f32 %v869, %v980
    %v989 = vadd.f32 %v870, %v983
    %v990 = vadd.f32 %v871, %v985
    %v991 = vld [vmem:[%s4] sm:$0x1]
    %v993 = vperm.slane %v991, 0
    %v995 = vadd.f32 %v987, %v993
    %v996 = vadd.f32 %v988, %v993
    %v997 = vadd.f32 %v989, %v993
    %v998 = vadd.f32 %v990, %v993
    %v999 = vmax.f32 %v995, 0.0
    %v1000 = vmax.f32 %v996, 0.0
    %v1001 = vmax.f32 %v997, 0.0
    %v1002 = vmax.f32 %v998, 0.0
    %v1003 = vmax.f32 %v999, %v1000
    %v1004 = vrot.slane %v1003, 4
    %v1005 = vmax.f32 %v1003, %v1004
    %v1006 = vrot.slane %v1005, 2
    %v1007 = vmax.f32 %v1005, %v1006
    %v1008 = vrot.slane %v1007, 1
    %v1009 = vmax.f32 %v1007, %v1008
    %v1010 = vmax.f32 %v1001, %v1002
    %v1011 = vrot.slane %v1010, 4
    %v1012 = vmax.f32 %v1010, %v1011
    %v1013 = vrot.slane %v1012, 2
    %v1014 = vmax.f32 %v1012, %v1013
    %v1015 = vrot.slane %v1014, 1
    %v1016 = vmax.f32 %v1014, %v1015
    %vm1019 = vcmask 1041409
    %v1020 = vsel %vm1019, %v1016, %v1009
    %1022 = vst [vmem:[#allocation7] sm:$0x3] %v1020
    // Predicated region
    $region26: #{tpu_custom_call.1} parent=1 // pred_check
      _
    $region27: #{tpu_custom_call.1} parent=1 // pred_check_branch
      %1024 = sbr.rel (0) target = $region29
    $region28: #{tpu_custom_call.1} parent=1 // pred_region
      %1026 = vsyncadd [#allocation6], 0
      %s1028 = sshll.u32 [#allocation7], 4
      %s1029 = int_to_ptr.vmem [resolvable:$true] %s1028
      %s1030 = sshll.u32 %s5, 4
      %s1031 = int_to_ptr.hbm [resolvable:$true] %s1030
      %1033 = dma.vmem_to_hbm [thread:$0]  %s1029, 32, %s1031, [#allocation6]
    $region29: #{tpu_custom_call.1} parent=1 // pred_fallthru
      _
    // Predicated region
    $region30: #{tpu_custom_call.1} parent=1 // pred_check
      _
    $region31: #{tpu_custom_call.1} parent=1 // pred_check_branch
      %1035 = sbr.rel (0) target = $region33
    $region32: #{tpu_custom_call.1} parent=1 // pred_region
      %1037 = dma.done [#allocation6], 32
    $region33: #{tpu_custom_call.1} parent=1 // pred_fallthru
      _
    %1038 = vsyncpa [#allocation5], 1
    %1039 = vsyncpa [#allocation6], 1

</llo_original>
